<compile_context>
chip_gen: v7x
topology: tpu7x:2x2x1
jax: 0.10.0
libtpu: 0.0.40
codegen_flags: <defaults>
</compile_context>

<pallas_src>
import jax
import jax.numpy as jnp
from jax.experimental import pallas as pl
from jax.experimental.pallas import tpu as pltpu

LANE = 128


def _round_up(x, m):
    return (x + m - 1) // m * m


def deep_head_kernel(title_ref, content_ref, extras_ref,
                     wt_ref, wc_ref, wo_ref, bo_ref, o_ref):
    # Two MXU matmuls (bf16 inputs, f32 accumulation) + precomputed extras.
    h = jnp.dot(title_ref[...], wt_ref[...], preferred_element_type=jnp.float32)
    h = h + jnp.dot(content_ref[...], wc_ref[...], preferred_element_type=jnp.float32)
    h = h + extras_ref[...]

    # Output layer, lane-padded to 128 tasks; padded biases are -1e30 in f32 so
    # their softmax probability is exactly 0 -> softmax over the 2 real columns
    # is exact.
    logits = jnp.dot(h, wo_ref[...], preferred_element_type=jnp.float32) + bo_ref[...]
    m = jnp.max(logits, axis=-1, keepdims=True)
    e = jnp.exp(logits - m)
    s = jnp.sum(e, axis=-1, keepdims=True)
    o_ref[...] = (e / s).astype(o_ref.dtype)


def deep_head_forward(title_emb, content_emb, author_idx, company_idx,
                      sentiment_idx, topic, params, *, block_batch=1024):
    """Fused forward of everything downstream of the two BERT encoders."""
    f32, bf16 = jnp.float32, jnp.bfloat16
    B, bert_h = title_emb.shape
    H = params["W_title"].shape[0]
    n_out = params["W_out"].shape[0]            # = 2
    TP = _round_up(n_out, LANE)                 # lane-dense output width (128)

    # ---- Tiny, data-dependent / K=5 work stays in plain JAX ("extras" fold) ----
    extras = (params["author_table"][author_idx].astype(f32)
              + params["company_table"][company_idx].astype(f32)
              + params["sentiment_table"][sentiment_idx].astype(f32)
              + topic.astype(f32) @ params["W_topic"].astype(f32).T
              + params["b_topic"].astype(f32)
              + params["b_title"].astype(f32)
              + params["b_text"].astype(f32))                       # [B, H] f32

    # ---- One-time weight prep: transpose to [K, N], stream matmul weights bf16 ----
    w_title = params["W_title"].T.astype(bf16)                      # [bert_h, H]
    w_text = params["W_text"].T.astype(bf16)                        # [bert_h, H]
    w_out = jnp.zeros((H, TP), f32).at[:, :n_out].set(params["W_out"].T.astype(f32))
    b_out = jnp.full((1, TP), -1e30, f32).at[0, :n_out].set(params["b_out"].astype(f32))

    title_bf = title_emb.astype(bf16)
    content_bf = content_emb.astype(bf16)

    # ---- Batch tiling: aim for >=~8 grid steps (megacore / pipelining), cap tile ----
    tm = _round_up(pl.cdiv(B, 8), 8)
    tm = max(8, min(tm, block_batch))

    # Guard tiny batches (< one sublane tile) with a minimal pad; no-op otherwise.
    if B < tm:
        pad = tm - B
        title_bf = jnp.pad(title_bf, ((0, pad), (0, 0)))
        content_bf = jnp.pad(content_bf, ((0, pad), (0, 0)))
        extras = jnp.pad(extras, ((0, pad), (0, 0)))
    B_arr = title_bf.shape[0]
    grid = (pl.cdiv(B_arr, tm),)

    def row_spec(cols):
        return pl.BlockSpec((tm, cols), lambda i: (i, 0))

    def const_spec(shape):
        return pl.BlockSpec(shape, lambda i: (0, 0))

    # VMEM: double-buffered activation tiles + resident weights (+1 MiB slack).
    tile_bytes = tm * (2 * bert_h * 2 + H * 4 + TP * 4)
    weight_bytes = 2 * bert_h * H * 2 + H * TP * 4 + TP * 4
    vmem_limit = min(max(2 * tile_bytes + weight_bytes + (1 << 20), 16 << 20), 48 << 20)

    flops = 2 * B_arr * (2 * bert_h * H + H * TP)
    bytes_accessed = (B_arr * (2 * bert_h * 2 + H * 4 + TP * 4)   # streamed rows
                      + weight_bytes)                             # resident weights

    out = pl.pallas_call(
        deep_head_kernel,
        out_shape=jax.ShapeDtypeStruct((B_arr, TP), f32),
        grid=grid,
        in_specs=[
            row_spec(bert_h),            # title pooled embedding (bf16)
            row_spec(bert_h),            # content pooled embedding (bf16)
            row_spec(H),                 # extras = embeddings + topic_mlp + biases (f32)
            const_spec((bert_h, H)),     # title_dim_reducer weight (bf16, [K, N])
            const_spec((bert_h, H)),     # text_dim_reducer weight  (bf16, [K, N])
            const_spec((H, TP)),         # output_layer weight (f32, lane-padded)
            const_spec((1, TP)),         # output_layer bias   (f32, -1e30 padded)
        ],
        out_specs=row_spec(TP),
        compiler_params=pltpu.CompilerParams(
            dimension_semantics=("parallel",),
            vmem_limit_bytes=int(vmem_limit)),
        cost_estimate=pl.CostEstimate(flops=flops,
                                      transcendentals=B_arr * TP,
                                      bytes_accessed=int(bytes_accessed)),
    )(title_bf, content_bf, extras, w_title, w_text, w_out, b_out)

    return out[:B, :n_out]


if __name__ == "__main__":
    batch = 8
    bert_hidden = 768            # BertConfig('bert-base-chinese').hidden_size
    hidden = 128                 # hidden_size arg of Deep (lane-dense choice)
    num_author, num_company, num_sentiment, num_topic = 16, 12, 4, 5

    key = jax.random.PRNGKey(0)
    keys = jax.random.split(key, 16)

    # Emulated pooled outputs of the two BERT encoders (see TODO above).
    title_emb = jax.random.normal(keys[0], (batch, bert_hidden), jnp.float32)
    content_emb = jax.random.normal(keys[1], (batch, bert_hidden), jnp.float32)
    author_idx = jax.random.randint(keys[2], (batch,), 0, num_author)
    company_idx = jax.random.randint(keys[3], (batch,), 0, num_company)
    sentiment_idx = jax.random.randint(keys[4], (batch,), 0, num_sentiment)
    topic = jax.random.normal(keys[5], (batch, num_topic), jnp.float32)

    sc = 0.05
    params = {
        "W_title": jax.random.normal(keys[6], (hidden, bert_hidden), jnp.float32) * sc,
        "b_title": jax.random.normal(keys[7], (hidden,), jnp.float32) * sc,
        "W_text": jax.random.normal(keys[8], (hidden, bert_hidden), jnp.float32) * sc,
        "b_text": jax.random.normal(keys[9], (hidden,), jnp.float32) * sc,
        "author_table": jax.random.normal(keys[10], (num_author, hidden), jnp.float32) * sc,
        "company_table": jax.random.normal(keys[11], (num_company, hidden), jnp.float32) * sc,
        "sentiment_table": jax.random.normal(keys[12], (num_sentiment, hidden), jnp.float32) * sc,
        "W_topic": jax.random.normal(keys[13], (hidden, num_topic), jnp.float32) * sc,
        "b_topic": jax.random.normal(keys[14], (hidden,), jnp.float32) * sc,
        "W_out": jax.random.normal(keys[15], (2, hidden), jnp.float32) * sc,
        "b_out": jnp.zeros((2,), jnp.float32),
    }

    out = deep_head_forward(title_emb, content_emb, author_idx, company_idx,
                            sentiment_idx, topic, params)
    out = jax.block_until_ready(out)

    # Pure-JAX f32 reference (same math as the PyTorch forward, downstream of BERT).
    with jax.default_matmul_precision("float32"):
        h = (title_emb @ params["W_title"].T + params["b_title"]
             + content_emb @ params["W_text"].T + params["b_text"]
             + params["author_table"][author_idx]
             + params["company_table"][company_idx]
             + params["sentiment_table"][sentiment_idx]
             + topic @ params["W_topic"].T + params["b_topic"])
        logits = h @ params["W_out"].T + params["b_out"]
        ref = jax.nn.softmax(logits, axis=1)

    assert out.shape == (batch, 2)
    # bf16 streaming of the two 768-wide matmuls -> slightly looser tolerance.
    err = float(jnp.max(jnp.abs(out - ref)))
    assert jnp.allclose(out, ref, atol=2e-2, rtol=2e-2), err
    assert jnp.allclose(jnp.sum(out, axis=1), 1.0, atol=1e-5)
    print("KERNEL_OK")
</pallas_src>

<mosaic_0001>
module attributes {stable_mosaic.version = 11 : i64} {
  func.func @deep_head_kernel(%arg0: i32, %arg1: memref<8x768xbf16, #tpu.memory_space<vmem>>, %arg2: memref<8x768xbf16, #tpu.memory_space<vmem>>, %arg3: memref<8x128xf32, #tpu.memory_space<vmem>>, %arg4: memref<768x128xbf16, #tpu.memory_space<vmem>>, %arg5: memref<768x128xbf16, #tpu.memory_space<vmem>>, %arg6: memref<128x128xf32, #tpu.memory_space<vmem>>, %arg7: memref<1x128xf32, #tpu.memory_space<vmem>>, %arg8: memref<8x128xf32, #tpu.memory_space<vmem>>) attributes {dimension_semantics = [#tpu.dimension_semantics<parallel>], iteration_bounds = array<i64: 1>, scalar_prefetch = 0 : i64, scratch_operands = 0 : i64, tpu.core_type = #tpu.core_type<tc>, window_params = [{transform_indices = @transform_0, window_bounds = array<i64: 8, 768>}, {transform_indices = @transform_1, window_bounds = array<i64: 8, 768>}, {transform_indices = @transform_2, window_bounds = array<i64: 8, 128>}, {pipeline_mode = #tpu.pipeline_mode<synchronous>, transform_indices = @transform_3, window_bounds = array<i64: 768, 128>}, {pipeline_mode = #tpu.pipeline_mode<synchronous>, transform_indices = @transform_4, window_bounds = array<i64: 768, 128>}, {pipeline_mode = #tpu.pipeline_mode<synchronous>, transform_indices = @transform_5, window_bounds = array<i64: 128, 128>}, {pipeline_mode = #tpu.pipeline_mode<synchronous>, transform_indices = @transform_6, window_bounds = array<i64: 1, 128>}, {transform_indices = @transform_7, window_bounds = array<i64: 8, 128>}]} {
    %c0 = arith.constant 0 : index
    %c0_0 = arith.constant 0 : index
    %0 = vector.load %arg1[%c0, %c0_0] : memref<8x768xbf16, #tpu.memory_space<vmem>>, vector<8x768xbf16>
    %c0_1 = arith.constant 0 : index
    %c0_2 = arith.constant 0 : index
    %1 = vector.load %arg4[%c0_1, %c0_2] : memref<768x128xbf16, #tpu.memory_space<vmem>>, vector<768x128xbf16>
    %cst = arith.constant dense<0.000000e+00> : vector<8x128xf32>
    %2 = tpu.matmul %0, %1, %cst {dimension_numbers = #tpu.dot_dimension_numbers<[1], [0], [0], [1], [0, 0, 1, 1], [], []>} : vector<8x768xbf16>, vector<768x128xbf16>, vector<8x128xf32> -> vector<8x128xf32>
    %c0_3 = arith.constant 0 : index
    %c0_4 = arith.constant 0 : index
    %3 = vector.load %arg2[%c0_3, %c0_4] : memref<8x768xbf16, #tpu.memory_space<vmem>>, vector<8x768xbf16>
    %c0_5 = arith.constant 0 : index
    %c0_6 = arith.constant 0 : index
    %4 = vector.load %arg5[%c0_5, %c0_6] : memref<768x128xbf16, #tpu.memory_space<vmem>>, vector<768x128xbf16>
    %cst_7 = arith.constant dense<0.000000e+00> : vector<8x128xf32>
    %5 = tpu.matmul %3, %4, %cst_7 {dimension_numbers = #tpu.dot_dimension_numbers<[1], [0], [0], [1], [0, 0, 1, 1], [], []>} : vector<8x768xbf16>, vector<768x128xbf16>, vector<8x128xf32> -> vector<8x128xf32>
    %6 = arith.addf %2, %5 : vector<8x128xf32>
    %c0_8 = arith.constant 0 : index
    %c0_9 = arith.constant 0 : index
    %7 = vector.load %arg3[%c0_8, %c0_9] : memref<8x128xf32, #tpu.memory_space<vmem>>, vector<8x128xf32>
    %8 = arith.addf %6, %7 : vector<8x128xf32>
    %c0_10 = arith.constant 0 : index
    %c0_11 = arith.constant 0 : index
    %9 = vector.load %arg6[%c0_10, %c0_11] : memref<128x128xf32, #tpu.memory_space<vmem>>, vector<128x128xf32>
    %cst_12 = arith.constant dense<0.000000e+00> : vector<8x128xf32>
    %10 = tpu.matmul %8, %9, %cst_12 {dimension_numbers = #tpu.dot_dimension_numbers<[1], [0], [0], [1], [0, 0, 1, 1], [], []>} : vector<8x128xf32>, vector<128x128xf32>, vector<8x128xf32> -> vector<8x128xf32>
    %c0_13 = arith.constant 0 : index
    %c0_14 = arith.constant 0 : index
    %11 = vector.load %arg7[%c0_13, %c0_14] : memref<1x128xf32, #tpu.memory_space<vmem>>, vector<1x128xf32>
    %12 = vector.broadcast %11 : vector<1x128xf32> to vector<8x128xf32>
    %13 = arith.addf %10, %12 : vector<8x128xf32>
    %cst_15 = arith.constant dense<0xFF800000> : vector<8xf32>
    %14 = vector.multi_reduction <maximumf>, %13, %cst_15 [1] : vector<8x128xf32> to vector<8xf32>
    %15 = vector.shape_cast %14 : vector<8xf32> to vector<8x1xf32>
    %16 = vector.broadcast %15 : vector<8x1xf32> to vector<8x128xf32>
    %17 = arith.subf %13, %16 : vector<8x128xf32>
    %18 = math.exp %17 : vector<8x128xf32>
    %cst_16 = arith.constant dense<0.000000e+00> : vector<8xf32>
    %19 = vector.multi_reduction <add>, %18, %cst_16 [1] : vector<8x128xf32> to vector<8xf32>
    %20 = vector.shape_cast %19 : vector<8xf32> to vector<8x1xf32>
    %21 = vector.broadcast %20 : vector<8x1xf32> to vector<8x128xf32>
    %22 = arith.divf %18, %21 : vector<8x128xf32>
    %c0_17 = arith.constant 0 : index
    %c0_18 = arith.constant 0 : index
    %23 = vector.load %arg8[%c0_17, %c0_18] : memref<8x128xf32, #tpu.memory_space<vmem>>, vector<8x128xf32>
    tpu.vector_store %arg8[%c0_17, %c0_18], %22 {strides = array<i32>} : memref<8x128xf32, #tpu.memory_space<vmem>>, vector<8x128xf32>,
    return
  }
  func.func @transform_0(%arg0: i32) -> (i32, i32) {
    %c0_i32 = arith.constant 0 : i32
    %c0_i32_0 = arith.constant 0 : i32
    return %arg0, %c0_i32 : i32, i32
  }
  func.func @transform_1(%arg0: i32) -> (i32, i32) {
    %c0_i32 = arith.constant 0 : i32
    %c0_i32_0 = arith.constant 0 : i32
    return %arg0, %c0_i32 : i32, i32
  }
  func.func @transform_2(%arg0: i32) -> (i32, i32) {
    %c0_i32 = arith.constant 0 : i32
    %c0_i32_0 = arith.constant 0 : i32
    return %arg0, %c0_i32 : i32, i32
  }
  func.func @transform_3(%arg0: i32) -> (i32, i32) {
    %c0_i32 = arith.constant 0 : i32
    %c0_i32_0 = arith.constant 0 : i32
    %c0_i32_1 = arith.constant 0 : i32
    return %c0_i32, %c0_i32_0 : i32, i32
  }
  func.func @transform_4(%arg0: i32) -> (i32, i32) {
    %c0_i32 = arith.constant 0 : i32
    %c0_i32_0 = arith.constant 0 : i32
    %c0_i32_1 = arith.constant 0 : i32
    return %c0_i32, %c0_i32_0 : i32, i32
  }
  func.func @transform_5(%arg0: i32) -> (i32, i32) {
    %c0_i32 = arith.constant 0 : i32
    %c0_i32_0 = arith.constant 0 : i32
    %c0_i32_1 = arith.constant 0 : i32
    return %c0_i32, %c0_i32_0 : i32, i32
  }
  func.func @transform_6(%arg0: i32) -> (i32, i32) {
    %c0_i32 = arith.constant 0 : i32
    %c0_i32_0 = arith.constant 0 : i32
    %c0_i32_1 = arith.constant 0 : i32
    return %c0_i32, %c0_i32_0 : i32, i32
  }
  func.func @transform_7(%arg0: i32) -> (i32, i32) {
    %c0_i32 = arith.constant 0 : i32
    %c0_i32_0 = arith.constant 0 : i32
    return %arg0, %c0_i32 : i32, i32
  }
}

</mosaic_0001>

<llo_original>
// kernel: tpu_custom_call.1
$region0: #{tpu_custom_call.1}
  #allocation0 [shape = 'u32[]', space=smem, size = 0x4, offset = 0x4, fixed_abs, tag = 'smem constant byte address 0x4 - core index']
  #allocation1 [shape = 'u32[144,128]{1,0:T(1,128)}', space=vmem, size = 0x12000, scoped, tag = 'internal scratch']
  %s0 = inlined_call_operand.hbm [shape: bf16[8,768], index: 0, kind: input, shape index: {}]
  %s1 = inlined_call_operand.hbm [shape: bf16[8,768], index: 1, kind: input, shape index: {}]
  %s2 = inlined_call_operand.hbm [shape: f32[8,128], index: 2, kind: input, shape index: {}]
  %s3 = inlined_call_operand.hbm [shape: bf16[768,128], index: 3, kind: input, shape index: {}]
  %s4 = inlined_call_operand.hbm [shape: bf16[768,128], index: 4, kind: input, shape index: {}]
  %s5 = inlined_call_operand.hbm [shape: f32[128,128], index: 5, kind: input, shape index: {}]
  %s6 = inlined_call_operand.vmem [shape: f32[1,128], index: 6, kind: input, shape index: {}]
  %s7 = inlined_call_operand.hbm [shape: f32[8,128], index: 7, kind: output, shape index: {}]
  %s8 = sld [smem:[#allocation0]]
  $region62: #{tpu_custom_call.1} parent=0
    _
  %s10 = ssub.s32 1, %s8
  %s11 = scalar_select 0, %s10, %s8
  $region1: #{tpu_custom_call.1} parent=0
    #allocation2 [shape = 'u8[12288]{0}', space=vmem, size = 0x3000, scoped, tag = 'input window, operand 0, single buffered']
    #allocation3 [shape = 's32[1]{0}', space=sflag, size = 0x4, scoped, tag = 'scoped memory for tpu_custom_call.1']
    #allocation4 [shape = 's32[1]{0}', space=sflag, size = 0x4, scoped, tag = 'scoped memory for tpu_custom_call.1']
    #allocation5 [shape = 'u8[12288]{0}', space=vmem, size = 0x3000, scoped, tag = 'input window, operand 1, single buffered']
    #allocation6 [shape = 's32[1]{0}', space=sflag, size = 0x4, scoped, tag = 'scoped memory for tpu_custom_call.1']
    #allocation7 [shape = 'u8[4096]{0}', space=vmem, size = 0x1000, scoped, tag = 'input window, operand 2, single buffered']
    #allocation8 [shape = 'u8[196608]{0}', space=vmem, size = 0x30000, scoped, tag = 'input window, operand 3, single buffered']
    #allocation9 [shape = 's32[1]{0}', space=sflag, size = 0x4, scoped, tag = 'scoped memory for tpu_custom_call.1']
    #allocation10 [shape = 'u8[196608]{0}', space=vmem, size = 0x30000, scoped, tag = 'input window, operand 4, single buffered']
    #allocation11 [shape = 'u8[65536]{0}', space=vmem, size = 0x10000, scoped, tag = 'input window, operand 5, single buffered']
    #allocation12 [shape = 's32[1]{0}', space=sflag, size = 0x4, scoped, tag = 'scoped memory for tpu_custom_call.1']
    #allocation13 [shape = 'u8[4096]{0}', space=vmem, size = 0x1000, scoped, tag = 'output window, operand 0, single buffered']
    %12 = vsyncpa [#allocation3], 0
    %13 = vsyncpa [#allocation6], 0
    %14 = vsyncpa [#allocation9], 0
    %15 = vsyncpa [#allocation12], 0
    %16 = vsyncpa [#allocation4], 0
    // Predicated region
    $region2: #{tpu_custom_call.1} parent=1 // pred_check
      _
    $region3: #{tpu_custom_call.1} parent=1 // pred_check_branch
      %18 = sbr.rel (0) target = $region5
    $region4: #{tpu_custom_call.1} parent=1 // pred_region
      %s20 = ssub.s32 384, 384
      %21 = vsyncadd [#allocation3], %s20
      %s23 = sshll.u32 [#allocation2], 4
      %s24 = int_to_ptr.vmem [resolvable:$true] %s23
      %26 = dma.hbm_to_vmem [thread:$0]  %s0, 384, %s24, [#allocation3]
    $region5: #{tpu_custom_call.1} parent=1 // pred_fallthru
      _
    // Predicated region
    $region6: #{tpu_custom_call.1} parent=1 // pred_check
      _
    $region7: #{tpu_custom_call.1} parent=1 // pred_check_branch
      %28 = sbr.rel (0) target = $region9
    $region8: #{tpu_custom_call.1} parent=1 // pred_region
      %s30 = ssub.s32 384, 384
      %31 = vsyncadd [#allocation6], %s30
      %s33 = sshll.u32 [#allocation5], 4
      %s34 = int_to_ptr.vmem [resolvable:$true] %s33
      %36 = dma.hbm_to_vmem [thread:$0]  %s1, 384, %s34, [#allocation6]
    $region9: #{tpu_custom_call.1} parent=1 // pred_fallthru
      _
    // Predicated region
    $region10: #{tpu_custom_call.1} parent=1 // pred_check
      _
    $region11: #{tpu_custom_call.1} parent=1 // pred_check_branch
      %38 = sbr.rel (0) target = $region13
    $region12: #{tpu_custom_call.1} parent=1 // pred_region
      %s40 = ssub.s32 128, 128
      %41 = vsyncadd [#allocation6], %s40
      %s43 = sshll.u32 [#allocation7], 4
      %s44 = int_to_ptr.vmem [resolvable:$true] %s43
      %46 = dma.hbm_to_vmem [thread:$0]  %s2, 128, %s44, [#allocation6]
    $region13: #{tpu_custom_call.1} parent=1 // pred_fallthru
      _
    // Predicated region
    $region14: #{tpu_custom_call.1} parent=1 // pred_check
      _
    $region15: #{tpu_custom_call.1} parent=1 // pred_check_branch
      %48 = sbr.rel (0) target = $region17
    $region16: #{tpu_custom_call.1} parent=1 // pred_region
      %s50 = ssub.s32 6144, 6144
      %51 = vsyncadd [#allocation9], %s50
      %s52 = sshll.u32 [#allocation8], 4
      %s53 = int_to_ptr.vmem [resolvable:$true] %s52
      %58 = dma.hbm_to_vmem [thread:$0]  %s3, 6144, %s53, [#allocation9], 64, 64, 4
    $region17: #{tpu_custom_call.1} parent=1 // pred_fallthru
      _
    // Predicated region
    $region18: #{tpu_custom_call.1} parent=1 // pred_check
      _
    $region19: #{tpu_custom_call.1} parent=1 // pred_check_branch
      %60 = sbr.rel (0) target = $region21
    $region20: #{tpu_custom_call.1} parent=1 // pred_region
      %s62 = ssub.s32 6144, 6144
      %63 = vsyncadd [#allocation9], %s62
      %s64 = sshll.u32 [#allocation10], 4
      %s65 = int_to_ptr.vmem [resolvable:$true] %s64
      %70 = dma.hbm_to_vmem [thread:$0]  %s4, 6144, %s65, [#allocation9], 64, 64, 4
    $region21: #{tpu_custom_call.1} parent=1 // pred_fallthru
      _
    // Predicated region
    $region22: #{tpu_custom_call.1} parent=1 // pred_check
      _
    $region23: #{tpu_custom_call.1} parent=1 // pred_check_branch
      %72 = sbr.rel (0) target = $region25
    $region24: #{tpu_custom_call.1} parent=1 // pred_region
      %s74 = ssub.s32 2048, 2048
      %75 = vsyncadd [#allocation12], %s74
      %s76 = sshll.u32 [#allocation11], 4
      %s77 = int_to_ptr.vmem [resolvable:$true] %s76
      %82 = dma.hbm_to_vmem [thread:$0]  %s5, 2048, %s77, [#allocation12], 128, 128, 8
    $region25: #{tpu_custom_call.1} parent=1 // pred_fallthru
      _
    // Predicated region
    $region26: #{tpu_custom_call.1} parent=1 // pred_check
      _
    $region27: #{tpu_custom_call.1} parent=1 // pred_check_branch
      %84 = sbr.rel (0) target = $region29
    $region28: #{tpu_custom_call.1} parent=1 // pred_region
      _
    $region29: #{tpu_custom_call.1} parent=1 // pred_fallthru
      _
    // Predicated region
    $region30: #{tpu_custom_call.1} parent=1 // pred_check
      _
    $region31: #{tpu_custom_call.1} parent=1 // pred_check_branch
      %86 = sbr.rel (0) target = $region33
    $region32: #{tpu_custom_call.1} parent=1 // pred_region
      %87 = dma.done [#allocation3], 384
    $region33: #{tpu_custom_call.1} parent=1 // pred_fallthru
      _
    // Predicated region
    $region34: #{tpu_custom_call.1} parent=1 // pred_check
      _
    $region35: #{tpu_custom_call.1} parent=1 // pred_check_branch
      %89 = sbr.rel (0) target = $region37
    $region36: #{tpu_custom_call.1} parent=1 // pred_region
      %90 = dma.done [#allocation6], 384
    $region37: #{tpu_custom_call.1} parent=1 // pred_fallthru
      _
    // Predicated region
    $region38: #{tpu_custom_call.1} parent=1 // pred_check
      _
    $region39: #{tpu_custom_call.1} parent=1 // pred_check_branch
      %92 = sbr.rel (0) target = $region41
    $region40: #{tpu_custom_call.1} parent=1 // pred_region
      %93 = dma.done [#allocation6], 128
    $region41: #{tpu_custom_call.1} parent=1 // pred_fallthru
      _
    // Predicated region
    $region42: #{tpu_custom_call.1} parent=1 // pred_check
      _
    $region43: #{tpu_custom_call.1} parent=1 // pred_check_branch
      %95 = sbr.rel (0) target = $region45
    $region44: #{tpu_custom_call.1} parent=1 // pred_region
      %96 = dma.done [#allocation9], 6144
    $region45: #{tpu_custom_call.1} parent=1 // pred_fallthru
      _
    // Predicated region
    $region46: #{tpu_custom_call.1} parent=1 // pred_check
      _
    $region47: #{tpu_custom_call.1} parent=1 // pred_check_branch
      %98 = sbr.rel (0) target = $region49
    $region48: #{tpu_custom_call.1} parent=1 // pred_region
      %99 = dma.done [#allocation9], 6144
    $region49: #{tpu_custom_call.1} parent=1 // pred_fallthru
      _
    // Predicated region
    $region50: #{tpu_custom_call.1} parent=1 // pred_check
      _
    $region51: #{tpu_custom_call.1} parent=1 // pred_check_branch
      %101 = sbr.rel (0) target = $region53
    $region52: #{tpu_custom_call.1} parent=1 // pred_region
      %102 = dma.done [#allocation12], 2048
    $region53: #{tpu_custom_call.1} parent=1 // pred_fallthru
      _
    %v104 = vld [vmem:[#allocation2] sm:$0xff]
    %v105 = vld [vmem:[#allocation2 + $0x8] sm:$0xff]
    %v106 = vld [vmem:[#allocation2 + $0x10] sm:$0xff]
    %v107 = vld [vmem:[#allocation8] sm:$0xf]
    %v108 = vld [vmem:[#allocation8 + $0x4] sm:$0xf]
    %v109 = vld [vmem:[#allocation8 + $0x8] sm:$0xf]
    %v110 = vld [vmem:[#allocation8 + $0xc] sm:$0xf]
    %v111 = vld [vmem:[#allocation8 + $0x10] sm:$0xf]
    %v112 = vld [vmem:[#allocation8 + $0x14] sm:$0xf]
    %v113 = vld [vmem:[#allocation8 + $0x18] sm:$0xf]
    %v114 = vld [vmem:[#allocation8 + $0x1c] sm:$0xf]
    %v115 = vld [vmem:[#allocation8 + $0x20] sm:$0xf]
    %v116 = vld [vmem:[#allocation8 + $0x24] sm:$0xf]
    %v117 = vld [vmem:[#allocation8 + $0x28] sm:$0xf]
    %v118 = vld [vmem:[#allocation8 + $0x2c] sm:$0xf]
    %v119 = vld [vmem:[#allocation8 + $0x30] sm:$0xf]
    %v120 = vld [vmem:[#allocation8 + $0x34] sm:$0xf]
    %v121 = vld [vmem:[#allocation8 + $0x38] sm:$0xf]
    %v122 = vld [vmem:[#allocation8 + $0x3c] sm:$0xf]
    %v123 = vld [vmem:[#allocation8 + $0x40] sm:$0xf]
    %v124 = vld [vmem:[#allocation8 + $0x44] sm:$0xf]
    %v125 = vld [vmem:[#allocation8 + $0x48] sm:$0xf]
    %v126 = vld [vmem:[#allocation8 + $0x4c] sm:$0xf]
    %v127 = vld [vmem:[#allocation8 + $0x50] sm:$0xf]
    %v128 = vld [vmem:[#allocation8 + $0x54] sm:$0xf]
    %v129 = vld [vmem:[#allocation8 + $0x58] sm:$0xf]
    %v130 = vld [vmem:[#allocation8 + $0x5c] sm:$0xf]
    %v131 = vld [vmem:[#allocation8 + $0x60] sm:$0xf]
    %v132 = vld [vmem:[#allocation8 + $0x64] sm:$0xf]
    %v133 = vld [vmem:[#allocation8 + $0x68] sm:$0xf]
    %v134 = vld [vmem:[#allocation8 + $0x6c] sm:$0xf]
    %v135 = vld [vmem:[#allocation8 + $0x70] sm:$0xf]
    %v136 = vld [vmem:[#allocation8 + $0x74] sm:$0xf]
    %v137 = vld [vmem:[#allocation8 + $0x78] sm:$0xf]
    %v138 = vld [vmem:[#allocation8 + $0x7c] sm:$0xf]
    %v139 = vld [vmem:[#allocation8 + $0x80] sm:$0xf]
    %v140 = vld [vmem:[#allocation8 + $0x84] sm:$0xf]
    %v141 = vld [vmem:[#allocation8 + $0x88] sm:$0xf]
    %v142 = vld [vmem:[#allocation8 + $0x8c] sm:$0xf]
    %v143 = vld [vmem:[#allocation8 + $0x90] sm:$0xf]
    %v144 = vld [vmem:[#allocation8 + $0x94] sm:$0xf]
    %v145 = vld [vmem:[#allocation8 + $0x98] sm:$0xf]
    %v146 = vld [vmem:[#allocation8 + $0x9c] sm:$0xf]
    %v147 = vld [vmem:[#allocation8 + $0xa0] sm:$0xf]
    %v148 = vld [vmem:[#allocation8 + $0xa4] sm:$0xf]
    %v149 = vld [vmem:[#allocation8 + $0xa8] sm:$0xf]
    %v150 = vld [vmem:[#allocation8 + $0xac] sm:$0xf]
    %v151 = vld [vmem:[#allocation8 + $0xb0] sm:$0xf]
    %v152 = vld [vmem:[#allocation8 + $0xb4] sm:$0xf]
    %v153 = vld [vmem:[#allocation8 + $0xb8] sm:$0xf]
    %v154 = vld [vmem:[#allocation8 + $0xbc] sm:$0xf]
    %v155 = vld [vmem:[#allocation8 + $0xc0] sm:$0xf]
    %v156 = vld [vmem:[#allocation8 + $0xc4] sm:$0xf]
    %v157 = vld [vmem:[#allocation8 + $0xc8] sm:$0xf]
    %v158 = vld [vmem:[#allocation8 + $0xcc] sm:$0xf]
    %v159 = vld [vmem:[#allocation8 + $0xd0] sm:$0xf]
    %v160 = vld [vmem:[#allocation8 + $0xd4] sm:$0xf]
    %v161 = vld [vmem:[#allocation8 + $0xd8] sm:$0xf]
    %v162 = vld [vmem:[#allocation8 + $0xdc] sm:$0xf]
    %v163 = vld [vmem:[#allocation8 + $0xe0] sm:$0xf]
    %v164 = vld [vmem:[#allocation8 + $0xe4] sm:$0xf]
    %v165 = vld [vmem:[#allocation8 + $0xe8] sm:$0xf]
    %v166 = vld [vmem:[#allocation8 + $0xec] sm:$0xf]
    %v167 = vld [vmem:[#allocation8 + $0xf0] sm:$0xf]
    %v168 = vld [vmem:[#allocation8 + $0xf4] sm:$0xf]
    %v169 = vld [vmem:[#allocation8 + $0xf8] sm:$0xf]
    %v170 = vld [vmem:[#allocation8 + $0xfc] sm:$0xf]
    %v171 = vld [vmem:[#allocation8 + $0x100] sm:$0xf]
    %v172 = vld [vmem:[#allocation8 + $0x104] sm:$0xf]
    %v173 = vld [vmem:[#allocation8 + $0x108] sm:$0xf]
    %v174 = vld [vmem:[#allocation8 + $0x10c] sm:$0xf]
    %v175 = vld [vmem:[#allocation8 + $0x110] sm:$0xf]
    %v176 = vld [vmem:[#allocation8 + $0x114] sm:$0xf]
    %v177 = vld [vmem:[#allocation8 + $0x118] sm:$0xf]
    %v178 = vld [vmem:[#allocation8 + $0x11c] sm:$0xf]
    %v179 = vld [vmem:[#allocation8 + $0x120] sm:$0xf]
    %v180 = vld [vmem:[#allocation8 + $0x124] sm:$0xf]
    %v181 = vld [vmem:[#allocation8 + $0x128] sm:$0xf]
    %v182 = vld [vmem:[#allocation8 + $0x12c] sm:$0xf]
    %v183 = vld [vmem:[#allocation8 + $0x130] sm:$0xf]
    %v184 = vld [vmem:[#allocation8 + $0x134] sm:$0xf]
    %v185 = vld [vmem:[#allocation8 + $0x138] sm:$0xf]
    %v186 = vld [vmem:[#allocation8 + $0x13c] sm:$0xf]
    %v187 = vld [vmem:[#allocation8 + $0x140] sm:$0xf]
    %v188 = vld [vmem:[#allocation8 + $0x144] sm:$0xf]
    %v189 = vld [vmem:[#allocation8 + $0x148] sm:$0xf]
    %v190 = vld [vmem:[#allocation8 + $0x14c] sm:$0xf]
    %v191 = vld [vmem:[#allocation8 + $0x150] sm:$0xf]
    %v192 = vld [vmem:[#allocation8 + $0x154] sm:$0xf]
    %v193 = vld [vmem:[#allocation8 + $0x158] sm:$0xf]
    %v194 = vld [vmem:[#allocation8 + $0x15c] sm:$0xf]
    %v195 = vld [vmem:[#allocation8 + $0x160] sm:$0xf]
    %v196 = vld [vmem:[#allocation8 + $0x164] sm:$0xf]
    %v197 = vld [vmem:[#allocation8 + $0x168] sm:$0xf]
    %v198 = vld [vmem:[#allocation8 + $0x16c] sm:$0xf]
    %v199 = vld [vmem:[#allocation8 + $0x170] sm:$0xf]
    %v200 = vld [vmem:[#allocation8 + $0x174] sm:$0xf]
    %v201 = vld [vmem:[#allocation8 + $0x178] sm:$0xf]
    %v202 = vld [vmem:[#allocation8 + $0x17c] sm:$0xf]
    %v203 = vld [vmem:[#allocation5] sm:$0xff]
    %v204 = vld [vmem:[#allocation5 + $0x8] sm:$0xff]
    %v205 = vld [vmem:[#allocation5 + $0x10] sm:$0xff]
    %v206 = vld [vmem:[#allocation10] sm:$0xf]
    %v207 = vld [vmem:[#allocation10 + $0x4] sm:$0xf]
    %v208 = vld [vmem:[#allocation10 + $0x8] sm:$0xf]
    %v209 = vld [vmem:[#allocation10 + $0xc] sm:$0xf]
    %v210 = vld [vmem:[#allocation10 + $0x10] sm:$0xf]
    %v211 = vld [vmem:[#allocation10 + $0x14] sm:$0xf]
    %v212 = vld [vmem:[#allocation10 + $0x18] sm:$0xf]
    %v213 = vld [vmem:[#allocation10 + $0x1c] sm:$0xf]
    %v214 = vld [vmem:[#allocation10 + $0x20] sm:$0xf]
    %v215 = vld [vmem:[#allocation10 + $0x24] sm:$0xf]
    %v216 = vld [vmem:[#allocation10 + $0x28] sm:$0xf]
    %v217 = vld [vmem:[#allocation10 + $0x2c] sm:$0xf]
    %v218 = vld [vmem:[#allocation10 + $0x30] sm:$0xf]
    %v219 = vld [vmem:[#allocation10 + $0x34] sm:$0xf]
    %v220 = vld [vmem:[#allocation10 + $0x38] sm:$0xf]
    %v221 = vld [vmem:[#allocation10 + $0x3c] sm:$0xf]
    %v222 = vld [vmem:[#allocation10 + $0x40] sm:$0xf]
    %v223 = vld [vmem:[#allocation10 + $0x44] sm:$0xf]
    %v224 = vld [vmem:[#allocation10 + $0x48] sm:$0xf]
    %v225 = vld [vmem:[#allocation10 + $0x4c] sm:$0xf]
    %v226 = vld [vmem:[#allocation10 + $0x50] sm:$0xf]
    %v227 = vld [vmem:[#allocation10 + $0x54] sm:$0xf]
    %v228 = vld [vmem:[#allocation10 + $0x58] sm:$0xf]
    %v229 = vld [vmem:[#allocation10 + $0x5c] sm:$0xf]
    %v230 = vld [vmem:[#allocation10 + $0x60] sm:$0xf]
    %v231 = vld [vmem:[#allocation10 + $0x64] sm:$0xf]
    %v232 = vld [vmem:[#allocation10 + $0x68] sm:$0xf]
    %v233 = vld [vmem:[#allocation10 + $0x6c] sm:$0xf]
    %v234 = vld [vmem:[#allocation10 + $0x70] sm:$0xf]
    %v235 = vld [vmem:[#allocation10 + $0x74] sm:$0xf]
    %v236 = vld [vmem:[#allocation10 + $0x78] sm:$0xf]
    %v237 = vld [vmem:[#allocation10 + $0x7c] sm:$0xf]
    %v238 = vld [vmem:[#allocation10 + $0x80] sm:$0xf]
    %v239 = vld [vmem:[#allocation10 + $0x84] sm:$0xf]
    %v240 = vld [vmem:[#allocation10 + $0x88] sm:$0xf]
    %v241 = vld [vmem:[#allocation10 + $0x8c] sm:$0xf]
    %v242 = vld [vmem:[#allocation10 + $0x90] sm:$0xf]
    %v243 = vld [vmem:[#allocation10 + $0x94] sm:$0xf]
    %v244 = vld [vmem:[#allocation10 + $0x98] sm:$0xf]
    %v245 = vld [vmem:[#allocation10 + $0x9c] sm:$0xf]
    %v246 = vld [vmem:[#allocation10 + $0xa0] sm:$0xf]
    %v247 = vld [vmem:[#allocation10 + $0xa4] sm:$0xf]
    %v248 = vld [vmem:[#allocation10 + $0xa8] sm:$0xf]
    %v249 = vld [vmem:[#allocation10 + $0xac] sm:$0xf]
    %v250 = vld [vmem:[#allocation10 + $0xb0] sm:$0xf]
    %v251 = vld [vmem:[#allocation10 + $0xb4] sm:$0xf]
    %v252 = vld [vmem:[#allocation10 + $0xb8] sm:$0xf]
    %v253 = vld [vmem:[#allocation10 + $0xbc] sm:$0xf]
    %v254 = vld [vmem:[#allocation10 + $0xc0] sm:$0xf]
    %v255 = vld [vmem:[#allocation10 + $0xc4] sm:$0xf]
    %v256 = vld [vmem:[#allocation10 + $0xc8] sm:$0xf]
    %v257 = vld [vmem:[#allocation10 + $0xcc] sm:$0xf]
    %v258 = vld [vmem:[#allocation10 + $0xd0] sm:$0xf]
    %v259 = vld [vmem:[#allocation10 + $0xd4] sm:$0xf]
    %v260 = vld [vmem:[#allocation10 + $0xd8] sm:$0xf]
    %v261 = vld [vmem:[#allocation10 + $0xdc] sm:$0xf]
    %v262 = vld [vmem:[#allocation10 + $0xe0] sm:$0xf]
    %v263 = vld [vmem:[#allocation10 + $0xe4] sm:$0xf]
    %v264 = vld [vmem:[#allocation10 + $0xe8] sm:$0xf]
    %v265 = vld [vmem:[#allocation10 + $0xec] sm:$0xf]
    %v266 = vld [vmem:[#allocation10 + $0xf0] sm:$0xf]
    %v267 = vld [vmem:[#allocation10 + $0xf4] sm:$0xf]
    %v268 = vld [vmem:[#allocation10 + $0xf8] sm:$0xf]
    %v269 = vld [vmem:[#allocation10 + $0xfc] sm:$0xf]
    %v270 = vld [vmem:[#allocation10 + $0x100] sm:$0xf]
    %v271 = vld [vmem:[#allocation10 + $0x104] sm:$0xf]
    %v272 = vld [vmem:[#allocation10 + $0x108] sm:$0xf]
    %v273 = vld [vmem:[#allocation10 + $0x10c] sm:$0xf]
    %v274 = vld [vmem:[#allocation10 + $0x110] sm:$0xf]
    %v275 = vld [vmem:[#allocation10 + $0x114] sm:$0xf]
    %v276 = vld [vmem:[#allocation10 + $0x118] sm:$0xf]
    %v277 = vld [vmem:[#allocation10 + $0x11c] sm:$0xf]
    %v278 = vld [vmem:[#allocation10 + $0x120] sm:$0xf]
    %v279 = vld [vmem:[#allocation10 + $0x124] sm:$0xf]
    %v280 = vld [vmem:[#allocation10 + $0x128] sm:$0xf]
    %v281 = vld [vmem:[#allocation10 + $0x12c] sm:$0xf]
    %v282 = vld [vmem:[#allocation10 + $0x130] sm:$0xf]
    %v283 = vld [vmem:[#allocation10 + $0x134] sm:$0xf]
    %v284 = vld [vmem:[#allocation10 + $0x138] sm:$0xf]
    %v285 = vld [vmem:[#allocation10 + $0x13c] sm:$0xf]
    %v286 = vld [vmem:[#allocation10 + $0x140] sm:$0xf]
    %v287 = vld [vmem:[#allocation10 + $0x144] sm:$0xf]
    %v288 = vld [vmem:[#allocation10 + $0x148] sm:$0xf]
    %v289 = vld [vmem:[#allocation10 + $0x14c] sm:$0xf]
    %v290 = vld [vmem:[#allocation10 + $0x150] sm:$0xf]
    %v291 = vld [vmem:[#allocation10 + $0x154] sm:$0xf]
    %v292 = vld [vmem:[#allocation10 + $0x158] sm:$0xf]
    %v293 = vld [vmem:[#allocation10 + $0x15c] sm:$0xf]
    %v294 = vld [vmem:[#allocation10 + $0x160] sm:$0xf]
    %v295 = vld [vmem:[#allocation10 + $0x164] sm:$0xf]
    %v296 = vld [vmem:[#allocation10 + $0x168] sm:$0xf]
    %v297 = vld [vmem:[#allocation10 + $0x16c] sm:$0xf]
    %v298 = vld [vmem:[#allocation10 + $0x170] sm:$0xf]
    %v299 = vld [vmem:[#allocation10 + $0x174] sm:$0xf]
    %v300 = vld [vmem:[#allocation10 + $0x178] sm:$0xf]
    %v301 = vld [vmem:[#allocation10 + $0x17c] sm:$0xf]
    %v305 = vunpack.c.l.b16 %v203
    %v306 = vunpack.c.h.b16 %v203
    %v307 = vunpack.c.l.b16 %v204
    %v308 = vunpack.c.h.b16 %v204
    %v309 = vunpack.c.l.b16 %v205
    %v310 = vunpack.c.h.b16 %v205
    %v311 = vpack.c.b16 %v305, %v305
    %v312 = vpack.c.b16 %v306, %v306
    %v313 = vpack.c.b16 %v307, %v307
    %v314 = vpack.c.b16 %v308, %v308
    %v315 = vpack.c.b16 %v309, %v309
    %v316 = vpack.c.b16 %v310, %v310
    %v419 = vunpack.c.l.b16 %v206
    %v420 = vunpack.c.l.b16 %v207
    %v421 = vunpack.c.l.b16 %v208
    %v422 = vunpack.c.l.b16 %v209
    %v423 = vunpack.c.l.b16 %v210
    %v424 = vunpack.c.l.b16 %v211
    %v425 = vunpack.c.l.b16 %v212
    %v426 = vunpack.c.l.b16 %v213
    %v427 = vunpack.c.l.b16 %v214
    %v428 = vunpack.c.l.b16 %v215
    %v429 = vunpack.c.l.b16 %v216
    %v430 = vunpack.c.l.b16 %v217
    %v431 = vunpack.c.l.b16 %v218
    %v432 = vunpack.c.l.b16 %v219
    %v433 = vunpack.c.l.b16 %v220
    %v434 = vunpack.c.l.b16 %v221
    %v435 = vunpack.c.l.b16 %v222
    %v436 = vunpack.c.l.b16 %v223
    %v437 = vunpack.c.l.b16 %v224
    %v438 = vunpack.c.l.b16 %v225
    %v439 = vunpack.c.l.b16 %v226
    %v440 = vunpack.c.l.b16 %v227
    %v441 = vunpack.c.l.b16 %v228
    %v442 = vunpack.c.l.b16 %v229
    %v443 = vunpack.c.l.b16 %v230
    %v444 = vunpack.c.l.b16 %v231
    %v445 = vunpack.c.l.b16 %v232
    %v446 = vunpack.c.l.b16 %v233
    %v447 = vunpack.c.l.b16 %v234
    %v448 = vunpack.c.l.b16 %v235
    %v449 = vunpack.c.l.b16 %v236
    %v450 = vunpack.c.l.b16 %v237
    %v451 = vunpack.c.l.b16 %v238
    %v452 = vunpack.c.l.b16 %v239
    %v453 = vunpack.c.l.b16 %v240
    %v454 = vunpack.c.l.b16 %v241
    %v455 = vunpack.c.l.b16 %v242
    %v456 = vunpack.c.l.b16 %v243
    %v457 = vunpack.c.l.b16 %v244
    %v458 = vunpack.c.l.b16 %v245
    %v459 = vunpack.c.l.b16 %v246
    %v460 = vunpack.c.l.b16 %v247
    %v461 = vunpack.c.l.b16 %v248
    %v462 = vunpack.c.l.b16 %v249
    %v463 = vunpack.c.l.b16 %v250
    %v464 = vunpack.c.l.b16 %v251
    %v465 = vunpack.c.l.b16 %v252
    %v466 = vunpack.c.l.b16 %v253
    %v467 = vunpack.c.l.b16 %v254
    %v468 = vunpack.c.l.b16 %v255
    %v469 = vunpack.c.l.b16 %v256
    %v470 = vunpack.c.l.b16 %v257
    %v471 = vunpack.c.l.b16 %v258
    %v472 = vunpack.c.l.b16 %v259
    %v473 = vunpack.c.l.b16 %v260
    %v474 = vunpack.c.l.b16 %v261
    %v475 = vunpack.c.l.b16 %v262
    %v476 = vunpack.c.l.b16 %v263
    %v477 = vunpack.c.l.b16 %v264
    %v478 = vunpack.c.l.b16 %v265
    %v479 = vunpack.c.l.b16 %v266
    %v480 = vunpack.c.l.b16 %v267
    %v481 = vunpack.c.l.b16 %v268
    %v482 = vunpack.c.l.b16 %v269
    %v483 = vunpack.c.l.b16 %v270
    %v484 = vunpack.c.l.b16 %v271
    %v485 = vunpack.c.l.b16 %v272
    %v486 = vunpack.c.l.b16 %v273
    %v487 = vunpack.c.l.b16 %v274
    %v488 = vunpack.c.l.b16 %v275
    %v489 = vunpack.c.l.b16 %v276
    %v490 = vunpack.c.l.b16 %v277
    %v491 = vunpack.c.l.b16 %v278
    %v492 = vunpack.c.l.b16 %v279
    %v493 = vunpack.c.l.b16 %v280
    %v494 = vunpack.c.l.b16 %v281
    %v495 = vunpack.c.l.b16 %v282
    %v496 = vunpack.c.l.b16 %v283
    %v497 = vunpack.c.l.b16 %v284
    %v498 = vunpack.c.l.b16 %v285
    %v499 = vunpack.c.l.b16 %v286
    %v500 = vunpack.c.l.b16 %v287
    %v501 = vunpack.c.l.b16 %v288
    %v502 = vunpack.c.l.b16 %v289
    %v503 = vunpack.c.l.b16 %v290
    %v504 = vunpack.c.l.b16 %v291
    %v505 = vunpack.c.l.b16 %v292
    %v506 = vunpack.c.l.b16 %v293
    %v507 = vunpack.c.l.b16 %v294
    %v508 = vunpack.c.l.b16 %v295
    %v509 = vunpack.c.l.b16 %v296
    %v510 = vunpack.c.l.b16 %v297
    %v511 = vunpack.c.l.b16 %v298
    %v512 = vunpack.c.l.b16 %v299
    %v513 = vunpack.c.l.b16 %v300
    %v514 = vunpack.c.l.b16 %v301
    %v515 = vpack.c.b16 %v420, %v419
    %v516 = vpack.c.b16 %v422, %v421
    %v517 = vpack.c.b16 %v424, %v423
    %v518 = vpack.c.b16 %v426, %v425
    %v519 = vpack.c.b16 %v428, %v427
    %v520 = vpack.c.b16 %v430, %v429
    %v521 = vpack.c.b16 %v432, %v431
    %v522 = vpack.c.b16 %v434, %v433
    %v523 = vpack.c.b16 %v436, %v435
    %v524 = vpack.c.b16 %v438, %v437
    %v525 = vpack.c.b16 %v440, %v439
    %v526 = vpack.c.b16 %v442, %v441
    %v527 = vpack.c.b16 %v444, %v443
    %v528 = vpack.c.b16 %v446, %v445
    %v529 = vpack.c.b16 %v448, %v447
    %v530 = vpack.c.b16 %v450, %v449
    %v531 = vpack.c.b16 %v452, %v451
    %v532 = vpack.c.b16 %v454, %v453
    %v533 = vpack.c.b16 %v456, %v455
    %v534 = vpack.c.b16 %v458, %v457
    %v535 = vpack.c.b16 %v460, %v459
    %v536 = vpack.c.b16 %v462, %v461
    %v537 = vpack.c.b16 %v464, %v463
    %v538 = vpack.c.b16 %v466, %v465
    %v539 = vpack.c.b16 %v468, %v467
    %v540 = vpack.c.b16 %v470, %v469
    %v541 = vpack.c.b16 %v472, %v471
    %v542 = vpack.c.b16 %v474, %v473
    %v543 = vpack.c.b16 %v476, %v475
    %v544 = vpack.c.b16 %v478, %v477
    %v545 = vpack.c.b16 %v480, %v479
    %v546 = vpack.c.b16 %v482, %v481
    %v547 = vpack.c.b16 %v484, %v483
    %v548 = vpack.c.b16 %v486, %v485
    %v549 = vpack.c.b16 %v488, %v487
    %v550 = vpack.c.b16 %v490, %v489
    %v551 = vpack.c.b16 %v492, %v491
    %v552 = vpack.c.b16 %v494, %v493
    %v553 = vpack.c.b16 %v496, %v495
    %v554 = vpack.c.b16 %v498, %v497
    %v555 = vpack.c.b16 %v500, %v499
    %v556 = vpack.c.b16 %v502, %v501
    %v557 = vpack.c.b16 %v504, %v503
    %v558 = vpack.c.b16 %v506, %v505
    %v559 = vpack.c.b16 %v508, %v507
    %v560 = vpack.c.b16 %v510, %v509
    %v561 = vpack.c.b16 %v512, %v511
    %v562 = vpack.c.b16 %v514, %v513
    %611 = vmatprep.subr.bf16.mxu0 0
    %612 = vmatpush1.bf16.msra.mxu0 %v515
    %613 = vmatprep.subr.bf16.mxu0 0
    %614 = vmatpush1.bf16.msra.mxu0 %v516
    %615 = vmatprep.subr.bf16.mxu0 0
    %616 = vmatpush1.bf16.msra.mxu0 %v517
    %617 = vmatprep.subr.bf16.mxu0 0
    %618 = vmatpush1.bf16.msra.mxu0 %v518
    %619 = vmatprep.subr.bf16.mxu0 0
    %620 = vmatpush1.bf16.msra.mxu0 %v519
    %621 = vmatprep.subr.bf16.mxu0 0
    %622 = vmatpush1.bf16.msra.mxu0 %v520
    %623 = vmatprep.subr.bf16.mxu0 0
    %624 = vmatpush1.bf16.msra.mxu0 %v521
    %625 = vmatprep.subr.bf16.mxu0 0
    %626 = vmatpush1.bf16.msra.mxu0 %v522
    %627 = vmatprep.subr.bf16.mxu0 0
    %628 = vmatpush1.bf16.msra.mxu0 %v523
    %629 = vmatprep.subr.bf16.mxu0 0
    %630 = vmatpush1.bf16.msra.mxu0 %v524
    %631 = vmatprep.subr.bf16.mxu0 0
    %632 = vmatpush1.bf16.msra.mxu0 %v525
    %633 = vmatprep.subr.bf16.mxu0 0
    %634 = vmatpush1.bf16.msra.mxu0 %v526
    %635 = vmatprep.subr.bf16.mxu0 0
    %636 = vmatpush1.bf16.msra.mxu0 %v527
    %637 = vmatprep.subr.bf16.mxu0 0
    %638 = vmatpush1.bf16.msra.mxu0 %v528
    %639 = vmatprep.subr.bf16.mxu0 0
    %640 = vmatpush1.bf16.msra.mxu0 %v529
    %641 = vmatprep.subr.bf16.mxu0 0
    %642 = vmatpush1.bf16.msra.mxu0 %v530
    %643 = vmatprep.mubr.bf16.mxu0 %v312
    %644 = vmatmul.mubr.bf16.gmra.mrb[0].mxu0 %v311
    %v645 = vpop.f32.mrb[0].mxu0
    %v646 = vadd.f32 0.0, %v645
    %v647 = vpop.f32.mrb[0].mxu0
    %v648 = vpop.f32.mrb[0].mxu0
    %v649 = vpop.f32.mrb[0].mxu0
    %650 = vdwg.mxu0
    %651 = vmatprep.subr.bf16.mxu0 0
    %652 = vmatpush1.bf16.msra.mxu0 %v531
    %653 = vmatprep.subr.bf16.mxu0 0
    %654 = vmatpush1.bf16.msra.mxu0 %v532
    %655 = vmatprep.subr.bf16.mxu0 0
    %656 = vmatpush1.bf16.msra.mxu0 %v533
    %657 = vmatprep.subr.bf16.mxu0 0
    %658 = vmatpush1.bf16.msra.mxu0 %v534
    %659 = vmatprep.subr.bf16.mxu0 0
    %660 = vmatpush1.bf16.msra.mxu0 %v535
    %661 = vmatprep.subr.bf16.mxu0 0
    %662 = vmatpush1.bf16.msra.mxu0 %v536
    %663 = vmatprep.subr.bf16.mxu0 0
    %664 = vmatpush1.bf16.msra.mxu0 %v537
    %665 = vmatprep.subr.bf16.mxu0 0
    %666 = vmatpush1.bf16.msra.mxu0 %v538
    %667 = vmatprep.subr.bf16.mxu0 0
    %668 = vmatpush1.bf16.msra.mxu0 %v539
    %669 = vmatprep.subr.bf16.mxu0 0
    %670 = vmatpush1.bf16.msra.mxu0 %v540
    %671 = vmatprep.subr.bf16.mxu0 0
    %672 = vmatpush1.bf16.msra.mxu0 %v541
    %673 = vmatprep.subr.bf16.mxu0 0
    %674 = vmatpush1.bf16.msra.mxu0 %v542
    %675 = vmatprep.subr.bf16.mxu0 0
    %676 = vmatpush1.bf16.msra.mxu0 %v543
    %677 = vmatprep.subr.bf16.mxu0 0
    %678 = vmatpush1.bf16.msra.mxu0 %v544
    %679 = vmatprep.subr.bf16.mxu0 0
    %680 = vmatpush1.bf16.msra.mxu0 %v545
    %681 = vmatprep.subr.bf16.mxu0 0
    %682 = vmatpush1.bf16.msra.mxu0 %v546
    %683 = vmatprep.mubr.bf16.mxu0 %v314
    %684 = vmatmul.mubr.bf16.gmra.mrb[0].mxu0 %v313
    %v685 = vpop.f32.mrb[0].mxu0
    %v686 = vadd.f32 %v646, %v685
    %v687 = vpop.f32.mrb[0].mxu0
    %v688 = vpop.f32.mrb[0].mxu0
    %v689 = vpop.f32.mrb[0].mxu0
    %690 = vdwg.mxu0
    %691 = vmatprep.subr.bf16.mxu0 0
    %692 = vmatpush1.bf16.msra.mxu0 %v547
    %693 = vmatprep.subr.bf16.mxu0 0
    %694 = vmatpush1.bf16.msra.mxu0 %v548
    %695 = vmatprep.subr.bf16.mxu0 0
    %696 = vmatpush1.bf16.msra.mxu0 %v549
    %697 = vmatprep.subr.bf16.mxu0 0
    %698 = vmatpush1.bf16.msra.mxu0 %v550
    %699 = vmatprep.subr.bf16.mxu0 0
    %700 = vmatpush1.bf16.msra.mxu0 %v551
    %701 = vmatprep.subr.bf16.mxu0 0
    %702 = vmatpush1.bf16.msra.mxu0 %v552
    %703 = vmatprep.subr.bf16.mxu0 0
    %704 = vmatpush1.bf16.msra.mxu0 %v553
    %705 = vmatprep.subr.bf16.mxu0 0
    %706 = vmatpush1.bf16.msra.mxu0 %v554
    %707 = vmatprep.subr.bf16.mxu0 0
    %708 = vmatpush1.bf16.msra.mxu0 %v555
    %709 = vmatprep.subr.bf16.mxu0 0
    %710 = vmatpush1.bf16.msra.mxu0 %v556
    %711 = vmatprep.subr.bf16.mxu0 0
    %712 = vmatpush1.bf16.msra.mxu0 %v557
    %713 = vmatprep.subr.bf16.mxu0 0
    %714 = vmatpush1.bf16.msra.mxu0 %v558
    %715 = vmatprep.subr.bf16.mxu0 0
    %716 = vmatpush1.bf16.msra.mxu0 %v559
    %717 = vmatprep.subr.bf16.mxu0 0
    %718 = vmatpush1.bf16.msra.mxu0 %v560
    %719 = vmatprep.subr.bf16.mxu0 0
    %720 = vmatpush1.bf16.msra.mxu0 %v561
    %721 = vmatprep.subr.bf16.mxu0 0
    %722 = vmatpush1.bf16.msra.mxu0 %v562
    %723 = vmatprep.mubr.bf16.mxu0 %v316
    %724 = vmatmul.mubr.bf16.gmra.mrb[0].mxu0 %v315
    %v725 = vpop.f32.mrb[0].mxu0
    %v726 = vadd.f32 %v686, %v725
    %v727 = vpop.f32.mrb[0].mxu0
    %v728 = vpop.f32.mrb[0].mxu0
    %v729 = vpop.f32.mrb[0].mxu0
    %730 = vdwg.mxu0
    %v734 = vunpack.c.l.b16 %v104
    %v735 = vunpack.c.h.b16 %v104
    %v736 = vunpack.c.l.b16 %v105
    %v737 = vunpack.c.h.b16 %v105
    %v738 = vunpack.c.l.b16 %v106
    %v739 = vunpack.c.h.b16 %v106
    %v740 = vpack.c.b16 %v734, %v734
    %v741 = vpack.c.b16 %v735, %v735
    %v742 = vpack.c.b16 %v736, %v736
    %v743 = vpack.c.b16 %v737, %v737
    %v744 = vpack.c.b16 %v738, %v738
    %v745 = vpack.c.b16 %v739, %v739
    %v848 = vunpack.c.l.b16 %v107
    %v849 = vunpack.c.l.b16 %v108
    %v850 = vunpack.c.l.b16 %v109
    %v851 = vunpack.c.l.b16 %v110
    %v852 = vunpack.c.l.b16 %v111
    %v853 = vunpack.c.l.b16 %v112
    %v854 = vunpack.c.l.b16 %v113
    %v855 = vunpack.c.l.b16 %v114
    %v856 = vunpack.c.l.b16 %v115
    %v857 = vunpack.c.l.b16 %v116
    %v858 = vunpack.c.l.b16 %v117
    %v859 = vunpack.c.l.b16 %v118
    %v860 = vunpack.c.l.b16 %v119
    %v861 = vunpack.c.l.b16 %v120
    %v862 = vunpack.c.l.b16 %v121
    %v863 = vunpack.c.l.b16 %v122
    %v864 = vunpack.c.l.b16 %v123
    %v865 = vunpack.c.l.b16 %v124
    %v866 = vunpack.c.l.b16 %v125
    %v867 = vunpack.c.l.b16 %v126
    %v868 = vunpack.c.l.b16 %v127
    %v869 = vunpack.c.l.b16 %v128
    %v870 = vunpack.c.l.b16 %v129
    %v871 = vunpack.c.l.b16 %v130
    %v872 = vunpack.c.l.b16 %v131
    %v873 = vunpack.c.l.b16 %v132
    %v874 = vunpack.c.l.b16 %v133
    %v875 = vunpack.c.l.b16 %v134
    %v876 = vunpack.c.l.b16 %v135
    %v877 = vunpack.c.l.b16 %v136
    %v878 = vunpack.c.l.b16 %v137
    %v879 = vunpack.c.l.b16 %v138
    %v880 = vunpack.c.l.b16 %v139
    %v881 = vunpack.c.l.b16 %v140
    %v882 = vunpack.c.l.b16 %v141
    %v883 = vunpack.c.l.b16 %v142
    %v884 = vunpack.c.l.b16 %v143
    %v885 = vunpack.c.l.b16 %v144
    %v886 = vunpack.c.l.b16 %v145
    %v887 = vunpack.c.l.b16 %v146
    %v888 = vunpack.c.l.b16 %v147
    %v889 = vunpack.c.l.b16 %v148
    %v890 = vunpack.c.l.b16 %v149
    %v891 = vunpack.c.l.b16 %v150
    %v892 = vunpack.c.l.b16 %v151
    %v893 = vunpack.c.l.b16 %v152
    %v894 = vunpack.c.l.b16 %v153
    %v895 = vunpack.c.l.b16 %v154
    %v896 = vunpack.c.l.b16 %v155
    %v897 = vunpack.c.l.b16 %v156
    %v898 = vunpack.c.l.b16 %v157
    %v899 = vunpack.c.l.b16 %v158
    %v900 = vunpack.c.l.b16 %v159
    %v901 = vunpack.c.l.b16 %v160
    %v902 = vunpack.c.l.b16 %v161
    %v903 = vunpack.c.l.b16 %v162
    %v904 = vunpack.c.l.b16 %v163
    %v905 = vunpack.c.l.b16 %v164
    %v906 = vunpack.c.l.b16 %v165
    %v907 = vunpack.c.l.b16 %v166
    %v908 = vunpack.c.l.b16 %v167
    %v909 = vunpack.c.l.b16 %v168
    %v910 = vunpack.c.l.b16 %v169
    %v911 = vunpack.c.l.b16 %v170
    %v912 = vunpack.c.l.b16 %v171
    %v913 = vunpack.c.l.b16 %v172
    %v914 = vunpack.c.l.b16 %v173
    %v915 = vunpack.c.l.b16 %v174
    %v916 = vunpack.c.l.b16 %v175
    %v917 = vunpack.c.l.b16 %v176
    %v918 = vunpack.c.l.b16 %v177
    %v919 = vunpack.c.l.b16 %v178
    %v920 = vunpack.c.l.b16 %v179
    %v921 = vunpack.c.l.b16 %v180
    %v922 = vunpack.c.l.b16 %v181
    %v923 = vunpack.c.l.b16 %v182
    %v924 = vunpack.c.l.b16 %v183
    %v925 = vunpack.c.l.b16 %v184
    %v926 = vunpack.c.l.b16 %v185
    %v927 = vunpack.c.l.b16 %v186
    %v928 = vunpack.c.l.b16 %v187
    %v929 = vunpack.c.l.b16 %v188
    %v930 = vunpack.c.l.b16 %v189
    %v931 = vunpack.c.l.b16 %v190
    %v932 = vunpack.c.l.b16 %v191
    %v933 = vunpack.c.l.b16 %v192
    %v934 = vunpack.c.l.b16 %v193
    %v935 = vunpack.c.l.b16 %v194
    %v936 = vunpack.c.l.b16 %v195
    %v937 = vunpack.c.l.b16 %v196
    %v938 = vunpack.c.l.b16 %v197
    %v939 = vunpack.c.l.b16 %v198
    %v940 = vunpack.c.l.b16 %v199
    %v941 = vunpack.c.l.b16 %v200
    %v942 = vunpack.c.l.b16 %v201
    %v943 = vunpack.c.l.b16 %v202
    %v944 = vpack.c.b16 %v849, %v848
    %v945 = vpack.c.b16 %v851, %v850
    %v946 = vpack.c.b16 %v853, %v852
    %v947 = vpack.c.b16 %v855, %v854
    %v948 = vpack.c.b16 %v857, %v856
    %v949 = vpack.c.b16 %v859, %v858
    %v950 = vpack.c.b16 %v861, %v860
    %v951 = vpack.c.b16 %v863, %v862
    %v952 = vpack.c.b16 %v865, %v864
    %v953 = vpack.c.b16 %v867, %v866
    %v954 = vpack.c.b16 %v869, %v868
    %v955 = vpack.c.b16 %v871, %v870
    %v956 = vpack.c.b16 %v873, %v872
    %v957 = vpack.c.b16 %v875, %v874
    %v958 = vpack.c.b16 %v877, %v876
    %v959 = vpack.c.b16 %v879, %v878
    %v960 = vpack.c.b16 %v881, %v880
    %v961 = vpack.c.b16 %v883, %v882
    %v962 = vpack.c.b16 %v885, %v884
    %v963 = vpack.c.b16 %v887, %v886
    %v964 = vpack.c.b16 %v889, %v888
    %v965 = vpack.c.b16 %v891, %v890
    %v966 = vpack.c.b16 %v893, %v892
    %v967 = vpack.c.b16 %v895, %v894
    %v968 = vpack.c.b16 %v897, %v896
    %v969 = vpack.c.b16 %v899, %v898
    %v970 = vpack.c.b16 %v901, %v900
    %v971 = vpack.c.b16 %v903, %v902
    %v972 = vpack.c.b16 %v905, %v904
    %v973 = vpack.c.b16 %v907, %v906
    %v974 = vpack.c.b16 %v909, %v908
    %v975 = vpack.c.b16 %v911, %v910
    %v976 = vpack.c.b16 %v913, %v912
    %v977 = vpack.c.b16 %v915, %v914
    %v978 = vpack.c.b16 %v917, %v916
    %v979 = vpack.c.b16 %v919, %v918
    %v980 = vpack.c.b16 %v921, %v920
    %v981 = vpack.c.b16 %v923, %v922
    %v982 = vpack.c.b16 %v925, %v924
    %v983 = vpack.c.b16 %v927, %v926
    %v984 = vpack.c.b16 %v929, %v928
    %v985 = vpack.c.b16 %v931, %v930
    %v986 = vpack.c.b16 %v933, %v932
    %v987 = vpack.c.b16 %v935, %v934
    %v988 = vpack.c.b16 %v937, %v936
    %v989 = vpack.c.b16 %v939, %v938
    %v990 = vpack.c.b16 %v941, %v940
    %v991 = vpack.c.b16 %v943, %v942
    %1040 = vmatprep.subr.bf16.mxu0 0
    %1041 = vmatpush1.bf16.msra.mxu0 %v944
    %1042 = vmatprep.subr.bf16.mxu0 0
    %1043 = vmatpush1.bf16.msra.mxu0 %v945
    %1044 = vmatprep.subr.bf16.mxu0 0
    %1045 = vmatpush1.bf16.msra.mxu0 %v946
    %1046 = vmatprep.subr.bf16.mxu0 0
    %1047 = vmatpush1.bf16.msra.mxu0 %v947
    %1048 = vmatprep.subr.bf16.mxu0 0
    %1049 = vmatpush1.bf16.msra.mxu0 %v948
    %1050 = vmatprep.subr.bf16.mxu0 0
    %1051 = vmatpush1.bf16.msra.mxu0 %v949
    %1052 = vmatprep.subr.bf16.mxu0 0
    %1053 = vmatpush1.bf16.msra.mxu0 %v950
    %1054 = vmatprep.subr.bf16.mxu0 0
    %1055 = vmatpush1.bf16.msra.mxu0 %v951
    %1056 = vmatprep.subr.bf16.mxu0 0
    %1057 = vmatpush1.bf16.msra.mxu0 %v952
    %1058 = vmatprep.subr.bf16.mxu0 0
    %1059 = vmatpush1.bf16.msra.mxu0 %v953
    %1060 = vmatprep.subr.bf16.mxu0 0
    %1061 = vmatpush1.bf16.msra.mxu0 %v954
    %1062 = vmatprep.subr.bf16.mxu0 0
    %1063 = vmatpush1.bf16.msra.mxu0 %v955
    %1064 = vmatprep.subr.bf16.mxu0 0
    %1065 = vmatpush1.bf16.msra.mxu0 %v956
    %1066 = vmatprep.subr.bf16.mxu0 0
    %1067 = vmatpush1.bf16.msra.mxu0 %v957
    %1068 = vmatprep.subr.bf16.mxu0 0
    %1069 = vmatpush1.bf16.msra.mxu0 %v958
    %1070 = vmatprep.subr.bf16.mxu0 0
    %1071 = vmatpush1.bf16.msra.mxu0 %v959
    %1072 = vmatprep.mubr.bf16.mxu0 %v741
    %1073 = vmatmul.mubr.bf16.gmra.mrb[0].mxu0 %v740
    %v1074 = vpop.f32.mrb[0].mxu0
    %v1075 = vadd.f32 %v726, %v1074
    %v1076 = vpop.f32.mrb[0].mxu0
    %v1077 = vpop.f32.mrb[0].mxu0
    %v1078 = vpop.f32.mrb[0].mxu0
    %1079 = vdwg.mxu0
    %1080 = vmatprep.subr.bf16.mxu0 0
    %1081 = vmatpush1.bf16.msra.mxu0 %v960
    %1082 = vmatprep.subr.bf16.mxu0 0
    %1083 = vmatpush1.bf16.msra.mxu0 %v961
    %1084 = vmatprep.subr.bf16.mxu0 0
    %1085 = vmatpush1.bf16.msra.mxu0 %v962
    %1086 = vmatprep.subr.bf16.mxu0 0
    %1087 = vmatpush1.bf16.msra.mxu0 %v963
    %1088 = vmatprep.subr.bf16.mxu0 0
    %1089 = vmatpush1.bf16.msra.mxu0 %v964
    %1090 = vmatprep.subr.bf16.mxu0 0
    %1091 = vmatpush1.bf16.msra.mxu0 %v965
    %1092 = vmatprep.subr.bf16.mxu0 0
    %1093 = vmatpush1.bf16.msra.mxu0 %v966
    %1094 = vmatprep.subr.bf16.mxu0 0
    %1095 = vmatpush1.bf16.msra.mxu0 %v967
    %1096 = vmatprep.subr.bf16.mxu0 0
    %1097 = vmatpush1.bf16.msra.mxu0 %v968
    %1098 = vmatprep.subr.bf16.mxu0 0
    %1099 = vmatpush1.bf16.msra.mxu0 %v969
    %1100 = vmatprep.subr.bf16.mxu0 0
    %1101 = vmatpush1.bf16.msra.mxu0 %v970
    %1102 = vmatprep.subr.bf16.mxu0 0
    %1103 = vmatpush1.bf16.msra.mxu0 %v971
    %1104 = vmatprep.subr.bf16.mxu0 0
    %1105 = vmatpush1.bf16.msra.mxu0 %v972
    %1106 = vmatprep.subr.bf16.mxu0 0
    %1107 = vmatpush1.bf16.msra.mxu0 %v973
    %1108 = vmatprep.subr.bf16.mxu0 0
    %1109 = vmatpush1.bf16.msra.mxu0 %v974
    %1110 = vmatprep.subr.bf16.mxu0 0
    %1111 = vmatpush1.bf16.msra.mxu0 %v975
    %1112 = vmatprep.mubr.bf16.mxu0 %v743
    %1113 = vmatmul.mubr.bf16.gmra.mrb[0].mxu0 %v742
    %v1114 = vpop.f32.mrb[0].mxu0
    %v1115 = vadd.f32 %v1075, %v1114
    %v1116 = vpop.f32.mrb[0].mxu0
    %v1117 = vpop.f32.mrb[0].mxu0
    %v1118 = vpop.f32.mrb[0].mxu0
    %1119 = vdwg.mxu0
    %1120 = vmatprep.subr.bf16.mxu0 0
    %1121 = vmatpush1.bf16.msra.mxu0 %v976
    %1122 = vmatprep.subr.bf16.mxu0 0
    %1123 = vmatpush1.bf16.msra.mxu0 %v977
    %1124 = vmatprep.subr.bf16.mxu0 0
    %1125 = vmatpush1.bf16.msra.mxu0 %v978
    %1126 = vmatprep.subr.bf16.mxu0 0
    %1127 = vmatpush1.bf16.msra.mxu0 %v979
    %1128 = vmatprep.subr.bf16.mxu0 0
    %1129 = vmatpush1.bf16.msra.mxu0 %v980
    %1130 = vmatprep.subr.bf16.mxu0 0
    %1131 = vmatpush1.bf16.msra.mxu0 %v981
    %1132 = vmatprep.subr.bf16.mxu0 0
    %1133 = vmatpush1.bf16.msra.mxu0 %v982
    %1134 = vmatprep.subr.bf16.mxu0 0
    %1135 = vmatpush1.bf16.msra.mxu0 %v983
    %1136 = vmatprep.subr.bf16.mxu0 0
    %1137 = vmatpush1.bf16.msra.mxu0 %v984
    %1138 = vmatprep.subr.bf16.mxu0 0
    %1139 = vmatpush1.bf16.msra.mxu0 %v985
    %1140 = vmatprep.subr.bf16.mxu0 0
    %1141 = vmatpush1.bf16.msra.mxu0 %v986
    %1142 = vmatprep.subr.bf16.mxu0 0
    %1143 = vmatpush1.bf16.msra.mxu0 %v987
    %1144 = vmatprep.subr.bf16.mxu0 0
    %1145 = vmatpush1.bf16.msra.mxu0 %v988
    %1146 = vmatprep.subr.bf16.mxu0 0
    %1147 = vmatpush1.bf16.msra.mxu0 %v989
    %1148 = vmatprep.subr.bf16.mxu0 0
    %1149 = vmatpush1.bf16.msra.mxu0 %v990
    %1150 = vmatprep.subr.bf16.mxu0 0
    %1151 = vmatpush1.bf16.msra.mxu0 %v991
    %1152 = vmatprep.mubr.bf16.mxu0 %v745
    %1153 = vmatmul.mubr.bf16.gmra.mrb[0].mxu0 %v744
    %v1154 = vpop.f32.mrb[0].mxu0
    %v1155 = vadd.f32 %v1115, %v1154
    %v1156 = vpop.f32.mrb[0].mxu0
    %v1157 = vpop.f32.mrb[0].mxu0
    %v1158 = vpop.f32.mrb[0].mxu0
    %1159 = vdwg.mxu0
    %v1160 = vld [vmem:[#allocation7] sm:$0xff]
    %v1161 = vadd.f32 %v1155, %v1160
    %v1162 = vld [vmem:[#allocation11] sm:$0xff]
    %v1163 = vld [vmem:[#allocation11 + $0x8] sm:$0xff]
    %v1164 = vld [vmem:[#allocation11 + $0x10] sm:$0xff]
    %v1165 = vld [vmem:[#allocation11 + $0x18] sm:$0xff]
    %v1166 = vld [vmem:[#allocation11 + $0x20] sm:$0xff]
    %v1167 = vld [vmem:[#allocation11 + $0x28] sm:$0xff]
    %v1168 = vld [vmem:[#allocation11 + $0x30] sm:$0xff]
    %v1169 = vld [vmem:[#allocation11 + $0x38] sm:$0xff]
    %v1170 = vld [vmem:[#allocation11 + $0x40] sm:$0xff]
    %v1171 = vld [vmem:[#allocation11 + $0x48] sm:$0xff]
    %v1172 = vld [vmem:[#allocation11 + $0x50] sm:$0xff]
    %v1173 = vld [vmem:[#allocation11 + $0x58] sm:$0xff]
    %v1174 = vld [vmem:[#allocation11 + $0x60] sm:$0xff]
    %v1175 = vld [vmem:[#allocation11 + $0x68] sm:$0xff]
    %v1176 = vld [vmem:[#allocation11 + $0x70] sm:$0xff]
    %v1177 = vld [vmem:[#allocation11 + $0x78] sm:$0xff]
    %v1178 = vld [vmem:[%s6] sm:$0x1]
    %v1180 = vlaneseq
    %v1181 = vshrl.u32 %v1180, 7
    %v1182 = vsub.s32 0, %v1181
    %v1183 = vrot.slane %v1178, %v1182
    %1185 = vmatprep.subr.mxu0 0.0
    %1186 = vmatpush1.msra.mxu0 %v1162
    %1187 = vmatprep.subr.mxu0 0.0
    %1188 = vmatpush1.msra.mxu0 %v1163
    %1189 = vmatprep.subr.mxu0 0.0
    %1190 = vmatpush1.msra.mxu0 %v1164
    %1191 = vmatprep.subr.mxu0 0.0
    %1192 = vmatpush1.msra.mxu0 %v1165
    %1193 = vmatprep.subr.mxu0 0.0
    %1194 = vmatpush1.msra.mxu0 %v1166
    %1195 = vmatprep.subr.mxu0 0.0
    %1196 = vmatpush1.msra.mxu0 %v1167
    %1197 = vmatprep.subr.mxu0 0.0
    %1198 = vmatpush1.msra.mxu0 %v1168
    %1199 = vmatprep.subr.mxu0 0.0
    %1200 = vmatpush1.msra.mxu0 %v1169
    %1201 = vmatprep.subr.mxu0 0.0
    %1202 = vmatpush1.msra.mxu0 %v1170
    %1203 = vmatprep.subr.mxu0 0.0
    %1204 = vmatpush1.msra.mxu0 %v1171
    %1205 = vmatprep.subr.mxu0 0.0
    %1206 = vmatpush1.msra.mxu0 %v1172
    %1207 = vmatprep.subr.mxu0 0.0
    %1208 = vmatpush1.msra.mxu0 %v1173
    %1209 = vmatprep.subr.mxu0 0.0
    %1210 = vmatpush1.msra.mxu0 %v1174
    %1211 = vmatprep.subr.mxu0 0.0
    %1212 = vmatpush1.msra.mxu0 %v1175
    %1213 = vmatprep.subr.mxu0 0.0
    %1214 = vmatpush1.msra.mxu0 %v1176
    %1215 = vmatprep.subr.mxu0 0.0
    %1216 = vmatpush1.msra.mxu0 %v1177
    %1217 = vmatprep.subr.mxu0 0.0
    %1218 = vmatpush1.msra.mxu0 0.0
    %1219 = vmatprep.subr.mxu0 0.0
    %1220 = vmatpush1.msra.mxu0 0.0
    %1221 = vmatprep.subr.mxu0 0.0
    %1222 = vmatpush1.msra.mxu0 0.0
    %1223 = vmatprep.subr.mxu0 0.0
    %1224 = vmatpush1.msra.mxu0 0.0
    %1225 = vmatprep.subr.mxu0 0.0
    %1226 = vmatpush1.msra.mxu0 0.0
    %1227 = vmatprep.subr.mxu0 0.0
    %1228 = vmatpush1.msra.mxu0 0.0
    %1229 = vmatprep.subr.mxu0 0.0
    %1230 = vmatpush1.msra.mxu0 0.0
    %1231 = vmatprep.subr.mxu0 0.0
    %1232 = vmatpush1.msra.mxu0 0.0
    %1233 = vmatprep.subr.mxu0 0.0
    %1234 = vmatpush1.msra.mxu0 0.0
    %1235 = vmatprep.subr.mxu0 0.0
    %1236 = vmatpush1.msra.mxu0 0.0
    %1237 = vmatprep.subr.mxu0 0.0
    %1238 = vmatpush1.msra.mxu0 0.0
    %1239 = vmatprep.subr.mxu0 0.0
    %1240 = vmatpush1.msra.mxu0 0.0
    %1241 = vmatprep.subr.mxu0 0.0
    %1242 = vmatpush1.msra.mxu0 0.0
    %1243 = vmatprep.subr.mxu0 0.0
    %1244 = vmatpush1.msra.mxu0 0.0
    %1245 = vmatprep.subr.mxu0 0.0
    %1246 = vmatpush1.msra.mxu0 0.0
    %1247 = vmatprep.subr.mxu0 0.0
    %1248 = vmatpush1.msra.mxu0 0.0
    %1249 = vmatprep.mubr.f32.mxu0 0.0
    %1250 = vmatmul.mubr.f32.gmra.mrb[0].mxu0 %v1161
    %v1251 = vpop.f32.mrb[0].mxu0
    %v1252 = vadd.f32 %v1183, %v1251
    %v1253 = vpop.f32.mrb[0].mxu0
    %1254 = vdwg.mxu0
    %1255 = vmax.xlane.f32.xlu0 %v1252
    %v1256 = vpop.xlane.xlu0 %1255
    %v1257 = vsub.f32 %v1252, %v1256
    %v1258 = vmul.f32 %v1257, 1.442695
    %v1259 = vpow.pop %v1258
    %1260 = vadd.xlane.f32.xlu0 %v1259
    %v1261 = vpop.xlane.xlu0 %1260
    %v1262 = vrcp.pop %v1261
    %v1263 = vmul.f32 %v1259, %v1262
    %1264 = vst [vmem:[#allocation13] sm:$0xff] %v1263
    // Predicated region
    $region54: #{tpu_custom_call.1} parent=1 // pred_check
      _
    $region55: #{tpu_custom_call.1} parent=1 // pred_check_branch
      %1266 = sbr.rel (0) target = $region57
    $region56: #{tpu_custom_call.1} parent=1 // pred_region
      %s1268 = ssub.s32 128, 128
      %1269 = vsyncadd [#allocation4], %s1268
      %s1271 = sshll.u32 [#allocation13], 4
      %s1272 = int_to_ptr.vmem [resolvable:$true] %s1271
      %1274 = dma.vmem_to_hbm [thread:$0]  %s1272, 128, %s7, [#allocation4]
    $region57: #{tpu_custom_call.1} parent=1 // pred_fallthru
      _
    // Predicated region
    $region58: #{tpu_custom_call.1} parent=1 // pred_check
      _
    $region59: #{tpu_custom_call.1} parent=1 // pred_check_branch
      %1276 = sbr.rel (0) target = $region61
    $region60: #{tpu_custom_call.1} parent=1 // pred_region
      %1277 = dma.done [#allocation4], 128
    $region61: #{tpu_custom_call.1} parent=1 // pred_fallthru
      _
    %1278 = vsyncpa [#allocation3], 1
    %1279 = vsyncpa [#allocation6], 1
    %1280 = vsyncpa [#allocation9], 1
    %1281 = vsyncpa [#allocation12], 1
    %1282 = vsyncpa [#allocation4], 1

</llo_original>
